<compile_context>
chip_gen: v7x
topology: tpu7x:2x2x1
jax: 0.10.0
libtpu: 0.0.40
codegen_flags: <defaults>
</compile_context>

<pallas_src>
import functools

import jax
import jax.numpy as jnp
from jax.experimental import pallas as pl
from jax.experimental.pallas import tpu as pltpu


def _simple_model_kernel(
    xh_ref,     # (B_blk, N, Din+H)     bf16   [x | h]
    adj_ref,    # (B_blk, N, N)         bf16   adjacency (only sign used)
    Wbig_ref,   # (Din+H, 2H+2+Dout)    bf16   fully fused projection weights
    bhb_ref,    # (1, H)                f32    bx + bh
    Wouta_ref,  # (H, Dout)             bf16   Wout rows acting on x_hidden
    bout_ref,   # (1, Dout)             f32    bout + (bx+bh) @ Wout_b
    out_ref,    # (B_blk, N, H+Dout)    f32    [h_new | output]
    *,
    alpha,      # LeakyReLU negative slope (module uses alpha=2)
    b_blk,
    n,
    h_dim,
    d_out,
):
    bn = b_blk * n
    din_h = xh_ref.shape[-1]

    xh = xh_ref[...].reshape(bn, din_h)                       # (BN, Din+H) bf16

    # ---- single fused MXU push for every dense projection ----
    comb = jnp.dot(xh, Wbig_ref[...], preferred_element_type=jnp.float32)
    Wh = comb[:, :h_dim]                                      # (BN, H)   GAT proj
    h_new = comb[:, h_dim:2 * h_dim] + bhb_ref[...]           # (BN, H)   f32 state
    f = comb[:, 2 * h_dim:2 * h_dim + 2]                      # (BN, 2)   attn halves
    outb = comb[:, 2 * h_dim + 2:]                            # (BN, Dout) h_new@Wout_b

    # ---- batched masked-softmax graph attention (no per-graph Python loop) ----
    Wh3 = Wh.reshape(b_blk, n, h_dim)
    f3 = f.reshape(b_blk, n, 2)
    # e[b, i, j] = leakyrelu(Wh_i . a1 + Wh_j . a2)
    e = f3[..., 0:1] + jnp.swapaxes(f3[..., 1:2], -1, -2)     # (B_blk, N, N)
    e = jnp.where(e > 0, e, alpha * e)                        # LeakyReLU(neg_slope=alpha)

    att = jnp.where(adj_ref[...] > 0, e, jnp.float32(-9.0e15))
    att_max = jnp.max(att, axis=-1, keepdims=True)
    p = jnp.exp(att - att_max)
    inv_sum = pl.reciprocal(jnp.sum(p, axis=-1, keepdims=True), approx=True)
    att = p * inv_sum
    # TODO(synk): F.dropout(attention) skipped (eval-mode semantics).

    h_prime = jnp.einsum('bij,bjh->bih',
                         att.astype(jnp.bfloat16), Wh3.astype(jnp.bfloat16),
                         preferred_element_type=jnp.float32)  # (B_blk, N, H)

    # concat=True -> ELU (exp only on the clamped-negative branch)
    x_hidden = jnp.where(h_prime > 0, h_prime,
                         jnp.exp(jnp.minimum(h_prime, 0.0)) - 1.0)
    x_hidden = x_hidden.reshape(bn, h_dim)

    # output = ReLU(x_hidden @ Wout_a + h_new @ Wout_b + bout)
    # (h_new @ Wout_b and the bias part already live in outb / bout_ref)
    out_pre = (
        jnp.dot(x_hidden.astype(jnp.bfloat16), Wouta_ref[...],
                preferred_element_type=jnp.float32)
        + outb + bout_ref[...]
    )                                                          # (BN, Dout)
    output = jnp.maximum(out_pre, 0.0)

    # slab layout: cols [0:H] = h_new (f32, no bf16 round-trip), cols [H:H+Dout] = output
    out_ref[:, :, :h_dim] = h_new.reshape(b_blk, n, h_dim)
    out_ref[:, :, h_dim:h_dim + d_out] = output.reshape(b_blk, n, d_out)


def _default_b_blk(B):
    # v7x has 2 TensorCores per chip -> keep 2 grid steps along the "parallel"
    # batch axis; v5e/v6e have a single TC -> one grid step (no split overhead,
    # full MXU row fill).
    try:
        kind = jax.devices()[0].device_kind.lower()
    except Exception:  # pragma: no cover
        kind = ""
    if "v7" in kind and B >= 2 and B % 2 == 0:
        return B // 2
    return B


def prepare_simple_model_params(params):
    """One-time host-side weight fusion (hoisted out of the per-step path)."""
    W, Wx, Whl = params["W"], params["Wx"], params["Whl"]
    a1, a2 = params["a1"], params["a2"]
    Wout, bout = params["Wout"], params["bout"]
    H = W.shape[1]
    Wout_a, Wout_b = Wout[:H], Wout[H:]

    top = jnp.concatenate([W, Wx, W @ a1, W @ a2, Wx @ Wout_b], axis=1)
    bot = jnp.concatenate(
        [jnp.zeros((H, H), jnp.float32), Whl,
         jnp.zeros((H, 2), jnp.float32), Whl @ Wout_b], axis=1)
    Wbig = jnp.concatenate([top, bot], axis=0).astype(jnp.bfloat16)

    bhb = (params["bx"] + params["bh"]).astype(jnp.float32)          # (1, H)
    bout_full = (bout + bhb @ Wout_b).astype(jnp.float32)            # (1, Dout)

    return dict(Wbig=Wbig, bhb=bhb,
                Wout_a=Wout_a.astype(jnp.bfloat16), bout=bout_full)


def simple_model_forward(x, adj, h, prepped, *, hidden_dim, output_dim,
                         alpha=2.0, b_blk=None):
    """x: (B,N,Din), adj: (B,N,N), h: (B,N,H) -> (output (B,N,Dout), h_new (B,N,H))."""
    B, N, Din = x.shape
    H, Dout = hidden_dim, output_dim
    slab_w = H + Dout

    if b_blk is None:
        b_blk = _default_b_blk(B)
    assert B % b_blk == 0
    # NOTE: at real sizes pick b_blk so b_blk*N >= 128 (v5e) / 256 (v6e, v7x)
    # rows, and cap it by VMEM on v7x (64 MiB) via CompilerParams(vmem_limit_bytes).

    xh = jnp.concatenate([x, h], axis=-1).astype(jnp.bfloat16)   # one DMA stream
    adj_bf = adj.astype(jnp.bfloat16)                            # only sign is used

    grid_spec = pltpu.PrefetchScalarGridSpec(
        num_scalar_prefetch=0,
        grid=(B // b_blk,),
        in_specs=[
            pl.BlockSpec((b_blk, N, Din + H), lambda b: (b, 0, 0)),       # xh
            pl.BlockSpec((b_blk, N, N), lambda b: (b, 0, 0)),             # adj
            pl.BlockSpec((Din + H, 2 * H + 2 + Dout), lambda b: (0, 0)),  # Wbig
            pl.BlockSpec((1, H), lambda b: (0, 0)),                       # bhb
            pl.BlockSpec((H, Dout), lambda b: (0, 0)),                    # Wout_a
            pl.BlockSpec((1, Dout), lambda b: (0, 0)),                    # bout
        ],
        out_specs=pl.BlockSpec((b_blk, N, slab_w), lambda b: (b, 0, 0)),
    )

    kernel = functools.partial(
        _simple_model_kernel,
        alpha=float(alpha), b_blk=b_blk, n=N, h_dim=H, d_out=Dout,
    )

    slab = pl.pallas_call(
        kernel,
        out_shape=jax.ShapeDtypeStruct((B, N, slab_w), jnp.float32),
        grid_spec=grid_spec,
        compiler_params=pltpu.CompilerParams(
            dimension_semantics=("parallel",),
        ),
    )(xh, adj_bf, prepped["Wbig"], prepped["bhb"], prepped["Wout_a"],
      prepped["bout"])

    h_new = slab[..., :H]
    output = slab[..., H:H + Dout]
    return output, h_new


def _reference(x, adj, h, params, alpha):
    """Pure-JAX f32 reference of the PyTorch module (eval mode)."""
    Wh = jnp.einsum('bnd,dh->bnh', x, params["W"])
    f1 = jnp.einsum('bnh,ho->bno', Wh, params["a1"])        # (B,N,1)
    f2 = jnp.einsum('bnh,ho->bno', Wh, params["a2"])        # (B,N,1)
    e = f1 + jnp.swapaxes(f2, 1, 2)
    e = jnp.where(e > 0, e, alpha * e)
    att = jnp.where(adj > 0, e, -9.0e15)
    att = jax.nn.softmax(att, axis=-1)
    h_prime = jnp.einsum('bij,bjh->bih', att, Wh)
    x_hidden = jnp.where(h_prime > 0, h_prime, jnp.exp(jnp.minimum(h_prime, 0.0)) - 1.0)
    h_new = (jnp.einsum('bnd,dh->bnh', x, params["Wx"]) + params["bx"]
             + jnp.einsum('bnh,hk->bnk', h, params["Whl"]) + params["bh"])
    total = jnp.concatenate([x_hidden, h_new], axis=-1)
    out = jnp.maximum(jnp.einsum('bnf,fo->bno', total, params["Wout"]) + params["bout"], 0.0)
    return out, h_new


def init_params(key, input_dim, hidden_dim, output_dim):
    ks = jax.random.split(key, 8)
    scale = 0.1
    W = scale * jax.random.normal(ks[0], (input_dim, hidden_dim), jnp.float32)
    a = scale * jax.random.normal(ks[1], (2 * hidden_dim, 1), jnp.float32)
    a1, a2 = a[:hidden_dim], a[hidden_dim:]
    # Temporal layer linears stored as (in, out); torch Linear stores (out, in).
    Wx = scale * jax.random.normal(ks[2], (input_dim, hidden_dim), jnp.float32)
    bx = scale * jax.random.normal(ks[3], (1, hidden_dim), jnp.float32)
    Whl = scale * jax.random.normal(ks[4], (hidden_dim, hidden_dim), jnp.float32)
    bh = scale * jax.random.normal(ks[5], (1, hidden_dim), jnp.float32)
    Wout = scale * jax.random.normal(ks[6], (2 * hidden_dim, output_dim), jnp.float32)
    bout = scale * jax.random.normal(ks[7], (1, output_dim), jnp.float32)
    return dict(W=W, a1=a1, a2=a2, Wx=Wx, bx=bx, Whl=Whl, bh=bh, Wout=Wout, bout=bout)


if __name__ == "__main__":
    B, N = 4, 8
    input_dim, hidden_dim, output_dim = 16, 32, 8

    key = jax.random.PRNGKey(0)
    k_x, k_adj, k_h, k_p = jax.random.split(key, 4)

    x = jax.random.normal(k_x, (B, N, input_dim), jnp.float32)
    adj = (jax.random.uniform(k_adj, (B, N, N)) > 0.5).astype(jnp.float32)
    # ensure self-loops so every softmax row has at least one unmasked entry
    adj = jnp.maximum(adj, jnp.eye(N, dtype=jnp.float32)[None, :, :])
    h = jax.random.normal(k_h, (B, N, hidden_dim), jnp.float32)

    params = init_params(k_p, input_dim, hidden_dim, output_dim)

    # one-time parameter fusion, hoisted out of the per-step path
    prepped = prepare_simple_model_params(params)
    jax.block_until_ready(prepped)

    fwd = jax.jit(functools.partial(
        simple_model_forward, hidden_dim=hidden_dim, output_dim=output_dim,
        alpha=2.0))

    output, h_new = fwd(x, adj, h, prepped)
    jax.block_until_ready((output, h_new))

    assert output.shape == (B, N, output_dim)
    assert h_new.shape == (B, N, hidden_dim)

    # sanity check against the f32 reference (kernel runs bf16 MXU inputs)
    out_ref, h_new_ref = _reference(x, adj, h, params, alpha=2.0)
    assert jnp.allclose(output, out_ref, atol=5e-2, rtol=5e-2)
    assert jnp.allclose(h_new, h_new_ref, atol=5e-2, rtol=5e-2)

    print("KERNEL_OK")
</pallas_src>

<mosaic_0001>
module attributes {stable_mosaic.version = 11 : i64} {
  func.func @_simple_model_kernel(%arg0: i32, %arg1: memref<4x8x48xbf16, #tpu.memory_space<vmem>>, %arg2: memref<4x8x8xbf16, #tpu.memory_space<vmem>>, %arg3: memref<48x74xbf16, #tpu.memory_space<vmem>>, %arg4: memref<1x32xf32, #tpu.memory_space<vmem>>, %arg5: memref<32x8xbf16, #tpu.memory_space<vmem>>, %arg6: memref<1x8xf32, #tpu.memory_space<vmem>>, %arg7: memref<4x8x40xf32, #tpu.memory_space<vmem>>) attributes {dimension_semantics = [#tpu.dimension_semantics<parallel>], iteration_bounds = array<i64: 1>, scalar_prefetch = 0 : i64, scratch_operands = 0 : i64, tpu.core_type = #tpu.core_type<tc>, window_params = [{transform_indices = @transform_0, window_bounds = array<i64: 4, 8, 48>}, {transform_indices = @transform_1, window_bounds = array<i64: 4, 8, 8>}, {pipeline_mode = #tpu.pipeline_mode<synchronous>, transform_indices = @transform_2, window_bounds = array<i64: 48, 74>}, {pipeline_mode = #tpu.pipeline_mode<synchronous>, transform_indices = @transform_3, window_bounds = array<i64: 1, 32>}, {pipeline_mode = #tpu.pipeline_mode<synchronous>, transform_indices = @transform_4, window_bounds = array<i64: 32, 8>}, {pipeline_mode = #tpu.pipeline_mode<synchronous>, transform_indices = @transform_5, window_bounds = array<i64: 1, 8>}, {transform_indices = @transform_6, window_bounds = array<i64: 4, 8, 40>}]} {
    %c0 = arith.constant 0 : index
    %c0_0 = arith.constant 0 : index
    %c0_1 = arith.constant 0 : index
    %0 = vector.load %arg1[%c0, %c0_0, %c0_1] : memref<4x8x48xbf16, #tpu.memory_space<vmem>>, vector<4x8x48xbf16>
    %1 = vector.shape_cast %0 : vector<4x8x48xbf16> to vector<32x48xbf16>
    %c0_2 = arith.constant 0 : index
    %c0_3 = arith.constant 0 : index
    %2 = vector.load %arg3[%c0_2, %c0_3] : memref<48x74xbf16, #tpu.memory_space<vmem>>, vector<48x74xbf16>
    %cst = arith.constant dense<0.000000e+00> : vector<32x74xf32>
    %3 = tpu.matmul %1, %2, %cst {dimension_numbers = #tpu.dot_dimension_numbers<[1], [0], [0], [1], [0, 0, 1, 1], [], []>} : vector<32x48xbf16>, vector<48x74xbf16>, vector<32x74xf32> -> vector<32x74xf32>
    %4 = vector.extract_strided_slice %3 {offsets = [0, 0], sizes = [32, 32], strides = [1, 1]} : vector<32x74xf32> to vector<32x32xf32>
    %5 = vector.extract_strided_slice %3 {offsets = [0, 32], sizes = [32, 32], strides = [1, 1]} : vector<32x74xf32> to vector<32x32xf32>
    %c0_4 = arith.constant 0 : index
    %c0_5 = arith.constant 0 : index
    %6 = vector.load %arg4[%c0_4, %c0_5] : memref<1x32xf32, #tpu.memory_space<vmem>>, vector<1x32xf32>
    %7 = vector.broadcast %6 : vector<1x32xf32> to vector<32x32xf32>
    %8 = arith.addf %5, %7 : vector<32x32xf32>
    %9 = vector.extract_strided_slice %3 {offsets = [0, 64], sizes = [32, 2], strides = [1, 1]} : vector<32x74xf32> to vector<32x2xf32>
    %10 = vector.extract_strided_slice %3 {offsets = [0, 66], sizes = [32, 8], strides = [1, 1]} : vector<32x74xf32> to vector<32x8xf32>
    %11 = vector.shape_cast %4 : vector<32x32xf32> to vector<4x8x32xf32>
    %12 = vector.shape_cast %9 : vector<32x2xf32> to vector<4x8x2xf32>
    %13 = vector.extract_strided_slice %12 {offsets = [0, 0, 0], sizes = [4, 8, 1], strides = [1, 1, 1]} : vector<4x8x2xf32> to vector<4x8x1xf32>
    %14 = vector.extract_strided_slice %12 {offsets = [0, 0, 1], sizes = [4, 8, 1], strides = [1, 1, 1]} : vector<4x8x2xf32> to vector<4x8x1xf32>
    %15 = tpu.transpose %14, [0, 2, 1] : vector<4x8x1xf32> -> vector<4x1x8xf32>
    %16 = vector.broadcast %13 : vector<4x8x1xf32> to vector<4x8x8xf32>
    %17 = vector.broadcast %15 : vector<4x1x8xf32> to vector<4x8x8xf32>
    %18 = arith.addf %16, %17 : vector<4x8x8xf32>
    %cst_6 = arith.constant 0.000000e+00 : f32
    %19 = vector.broadcast %cst_6 : f32 to vector<4x8x8xf32>
    %20 = arith.cmpf ogt, %18, %19 : vector<4x8x8xf32>
    %cst_7 = arith.constant 2.000000e+00 : f32
    %21 = vector.broadcast %cst_7 : f32 to vector<4x8x8xf32>
    %22 = arith.mulf %21, %18 : vector<4x8x8xf32>
    %23 = arith.select %20, %18, %22 : vector<4x8x8xi1>, vector<4x8x8xf32>
    %c0_8 = arith.constant 0 : index
    %c0_9 = arith.constant 0 : index
    %c0_10 = arith.constant 0 : index
    %24 = vector.load %arg2[%c0_8, %c0_9, %c0_10] : memref<4x8x8xbf16, #tpu.memory_space<vmem>>, vector<4x8x8xbf16>
    %cst_11 = arith.constant 0.000000e+00 : bf16
    %25 = vector.broadcast %cst_11 : bf16 to vector<4x8x8xbf16>
    %26 = arith.cmpf ogt, %24, %25 : vector<4x8x8xbf16>
    %cst_12 = arith.constant -9.000000e+15 : f32
    %27 = vector.broadcast %cst_12 : f32 to vector<4x8x8xf32>
    %28 = arith.select %26, %23, %27 : vector<4x8x8xi1>, vector<4x8x8xf32>
    %cst_13 = arith.constant dense<0xFF800000> : vector<4x8xf32>
    %29 = vector.multi_reduction <maximumf>, %28, %cst_13 [2] : vector<4x8x8xf32> to vector<4x8xf32>
    %30 = vector.shape_cast %29 : vector<4x8xf32> to vector<4x8x1xf32>
    %31 = vector.broadcast %30 : vector<4x8x1xf32> to vector<4x8x8xf32>
    %32 = arith.subf %28, %31 : vector<4x8x8xf32>
    %33 = math.exp %32 : vector<4x8x8xf32>
    %cst_14 = arith.constant dense<0.000000e+00> : vector<4x8xf32>
    %34 = vector.multi_reduction <add>, %33, %cst_14 [2] : vector<4x8x8xf32> to vector<4x8xf32>
    %35 = vector.shape_cast %34 : vector<4x8xf32> to vector<4x8x1xf32>
    %36 = tpu.reciprocal %35 {approx = true} : vector<4x8x1xf32> -> vector<4x8x1xf32>
    %37 = vector.broadcast %36 : vector<4x8x1xf32> to vector<4x8x8xf32>
    %38 = arith.mulf %33, %37 : vector<4x8x8xf32>
    %39 = arith.truncf %38 : vector<4x8x8xf32> to vector<4x8x8xbf16>
    %40 = arith.truncf %11 : vector<4x8x32xf32> to vector<4x8x32xbf16>
    "tpu.trace_start"() <{level = 10 : i32, message = "bij,bjh->bih"}> : () -> ()
    %cst_15 = arith.constant dense<0.000000e+00> : vector<4x8x32xf32>
    %41 = tpu.matmul %39, %40, %cst_15 {dimension_numbers = #tpu.dot_dimension_numbers<[2], [1], [1], [2], [0, 0, 0, 1, 1, 2], [0], [0]>} : vector<4x8x8xbf16>, vector<4x8x32xbf16>, vector<4x8x32xf32> -> vector<4x8x32xf32>
    %cst_16 = arith.constant 0.000000e+00 : f32
    "tpu.trace_stop"() : () -> ()
    %42 = vector.broadcast %cst_16 : f32 to vector<4x8x32xf32>
    %43 = arith.cmpf ogt, %41, %42 : vector<4x8x32xf32>
    %cst_17 = arith.constant 0.000000e+00 : f32
    %44 = vector.broadcast %cst_17 : f32 to vector<4x8x32xf32>
    %45 = arith.minimumf %41, %44 : vector<4x8x32xf32>
    %46 = math.exp %45 : vector<4x8x32xf32>
    %cst_18 = arith.constant 1.000000e+00 : f32
    %47 = vector.broadcast %cst_18 : f32 to vector<4x8x32xf32>
    %48 = arith.subf %46, %47 : vector<4x8x32xf32>
    %49 = arith.select %43, %41, %48 : vector<4x8x32xi1>, vector<4x8x32xf32>
    %50 = vector.shape_cast %49 : vector<4x8x32xf32> to vector<32x32xf32>
    %51 = arith.truncf %50 : vector<32x32xf32> to vector<32x32xbf16>
    %c0_19 = arith.constant 0 : index
    %c0_20 = arith.constant 0 : index
    %52 = vector.load %arg5[%c0_19, %c0_20] : memref<32x8xbf16, #tpu.memory_space<vmem>>, vector<32x8xbf16>
    %cst_21 = arith.constant dense<0.000000e+00> : vector<32x8xf32>
    %53 = tpu.matmul %51, %52, %cst_21 {dimension_numbers = #tpu.dot_dimension_numbers<[1], [0], [0], [1], [0, 0, 1, 1], [], []>} : vector<32x32xbf16>, vector<32x8xbf16>, vector<32x8xf32> -> vector<32x8xf32>
    %54 = arith.addf %53, %10 : vector<32x8xf32>
    %c0_22 = arith.constant 0 : index
    %c0_23 = arith.constant 0 : index
    %55 = vector.load %arg6[%c0_22, %c0_23] : memref<1x8xf32, #tpu.memory_space<vmem>>, vector<1x8xf32>
    %56 = vector.broadcast %55 : vector<1x8xf32> to vector<32x8xf32>
    %57 = arith.addf %54, %56 : vector<32x8xf32>
    %cst_24 = arith.constant 0.000000e+00 : f32
    %58 = vector.broadcast %cst_24 : f32 to vector<32x8xf32>
    %59 = arith.maximumf %57, %58 : vector<32x8xf32>
    %60 = vector.shape_cast %8 : vector<32x32xf32> to vector<4x8x32xf32>
    %c0_25 = arith.constant 0 : index
    %c0_26 = arith.constant 0 : index
    %c0_27 = arith.constant 0 : index
    %61 = vector.load %arg7[%c0_25, %c0_26, %c0_27] : memref<4x8x40xf32, #tpu.memory_space<vmem>>, vector<4x8x32xf32>
    tpu.vector_store %arg7[%c0_25, %c0_26, %c0_27], %60 {strides = array<i32>} : memref<4x8x40xf32, #tpu.memory_space<vmem>>, vector<4x8x32xf32>,
    %62 = vector.shape_cast %59 : vector<32x8xf32> to vector<4x8x8xf32>
    %c0_28 = arith.constant 0 : index
    %c0_29 = arith.constant 0 : index
    %c32 = arith.constant 32 : index
    %63 = vector.load %arg7[%c0_28, %c0_29, %c32] : memref<4x8x40xf32, #tpu.memory_space<vmem>>, vector<4x8x8xf32>
    tpu.vector_store %arg7[%c0_28, %c0_29, %c32], %62 {strides = array<i32>} : memref<4x8x40xf32, #tpu.memory_space<vmem>>, vector<4x8x8xf32>,
    return
  }
  func.func @transform_0(%arg0: i32) -> (i32, i32, i32) {
    %c0_i32 = arith.constant 0 : i32
    %c0_i32_0 = arith.constant 0 : i32
    %c0_i32_1 = arith.constant 0 : i32
    return %arg0, %c0_i32, %c0_i32_0 : i32, i32, i32
  }
  func.func @transform_1(%arg0: i32) -> (i32, i32, i32) {
    %c0_i32 = arith.constant 0 : i32
    %c0_i32_0 = arith.constant 0 : i32
    %c0_i32_1 = arith.constant 0 : i32
    return %arg0, %c0_i32, %c0_i32_0 : i32, i32, i32
  }
  func.func @transform_2(%arg0: i32) -> (i32, i32) {
    %c0_i32 = arith.constant 0 : i32
    %c0_i32_0 = arith.constant 0 : i32
    %c0_i32_1 = arith.constant 0 : i32
    return %c0_i32, %c0_i32_0 : i32, i32
  }
  func.func @transform_3(%arg0: i32) -> (i32, i32) {
    %c0_i32 = arith.constant 0 : i32
    %c0_i32_0 = arith.constant 0 : i32
    %c0_i32_1 = arith.constant 0 : i32
    return %c0_i32, %c0_i32_0 : i32, i32
  }
  func.func @transform_4(%arg0: i32) -> (i32, i32) {
    %c0_i32 = arith.constant 0 : i32
    %c0_i32_0 = arith.constant 0 : i32
    %c0_i32_1 = arith.constant 0 : i32
    return %c0_i32, %c0_i32_0 : i32, i32
  }
  func.func @transform_5(%arg0: i32) -> (i32, i32) {
    %c0_i32 = arith.constant 0 : i32
    %c0_i32_0 = arith.constant 0 : i32
    %c0_i32_1 = arith.constant 0 : i32
    return %c0_i32, %c0_i32_0 : i32, i32
  }
  func.func @transform_6(%arg0: i32) -> (i32, i32, i32) {
    %c0_i32 = arith.constant 0 : i32
    %c0_i32_0 = arith.constant 0 : i32
    %c0_i32_1 = arith.constant 0 : i32
    return %arg0, %c0_i32, %c0_i32_0 : i32, i32, i32
  }
}

</mosaic_0001>

<llo_original>
// kernel: simple_model_forward.1
$region0: #{simple_model_forward.1}
  #allocation0 [shape = 'u32[]', space=smem, size = 0x4, offset = 0x4, fixed_abs, tag = 'smem constant byte address 0x4 - core index']
  #allocation1 [shape = 'u32[144,128]{1,0:T(1,128)}', space=vmem, size = 0x12000, scoped, tag = 'internal scratch']
  %s0 = inlined_call_operand.vmem [shape: bf16[4,8,48], index: 0, kind: input, shape index: {}]
  %s1 = inlined_call_operand.vmem [shape: bf16[4,8,8], index: 1, kind: input, shape index: {}]
  %s2 = inlined_call_operand.vmem [shape: bf16[48,74], index: 2, kind: input, shape index: {}]
  %s3 = inlined_call_operand.vmem [shape: f32[1,32], index: 3, kind: input, shape index: {}]
  %s4 = inlined_call_operand.vmem [shape: bf16[32,8], index: 4, kind: input, shape index: {}]
  %s5 = inlined_call_operand.vmem [shape: f32[1,8], index: 5, kind: input, shape index: {}]
  %s6 = inlined_call_operand.vmem [shape: f32[4,8,40], index: 6, kind: output, shape index: {}]
  %s7 = sld [smem:[#allocation0]]
  $region34: #{simple_model_forward.1} parent=0
    _
  %s9 = ssub.s32 1, %s7
  %s10 = scalar_select 0, %s9, %s7
  // Predicated region
  $region2: #{simple_model_forward.1} parent=0 // pred_check
    _
  $region3: #{simple_model_forward.1} parent=0 // pred_check_branch
    %12 = sbr.rel (0) target = $region5
  $region4: #{simple_model_forward.1} parent=0 // pred_region
    _
  $region5: #{simple_model_forward.1} parent=0 // pred_fallthru
    _
  // Predicated region
  $region6: #{simple_model_forward.1} parent=0 // pred_check
    _
  $region7: #{simple_model_forward.1} parent=0 // pred_check_branch
    %14 = sbr.rel (0) target = $region9
  $region8: #{simple_model_forward.1} parent=0 // pred_region
    _
  $region9: #{simple_model_forward.1} parent=0 // pred_fallthru
    _
  // Predicated region
  $region10: #{simple_model_forward.1} parent=0 // pred_check
    _
  $region11: #{simple_model_forward.1} parent=0 // pred_check_branch
    %16 = sbr.rel (0) target = $region13
  $region12: #{simple_model_forward.1} parent=0 // pred_region
    _
  $region13: #{simple_model_forward.1} parent=0 // pred_fallthru
    _
  // Predicated region
  $region14: #{simple_model_forward.1} parent=0 // pred_check
    _
  $region15: #{simple_model_forward.1} parent=0 // pred_check_branch
    %18 = sbr.rel (0) target = $region17
  $region16: #{simple_model_forward.1} parent=0 // pred_region
    _
  $region17: #{simple_model_forward.1} parent=0 // pred_fallthru
    _
  // Predicated region
  $region18: #{simple_model_forward.1} parent=0 // pred_check
    _
  $region19: #{simple_model_forward.1} parent=0 // pred_check_branch
    %20 = sbr.rel (0) target = $region21
  $region20: #{simple_model_forward.1} parent=0 // pred_region
    _
  $region21: #{simple_model_forward.1} parent=0 // pred_fallthru
    _
  // Predicated region
  $region22: #{simple_model_forward.1} parent=0 // pred_check
    _
  $region23: #{simple_model_forward.1} parent=0 // pred_check_branch
    %22 = sbr.rel (0) target = $region25
  $region24: #{simple_model_forward.1} parent=0 // pred_region
    _
  $region25: #{simple_model_forward.1} parent=0 // pred_fallthru
    _
  %v26 = vld [vmem:[%s0] sm:$0xf]
  %v27 = vld [vmem:[%s0 + $0x4] sm:$0xf]
  %v28 = vld [vmem:[%s0 + $0x8] sm:$0xf]
  %v29 = vld [vmem:[%s0 + $0xc] sm:$0xf]
  %v30 = vld [vmem:[%s2] sm:$0xf]
  %v31 = vld [vmem:[%s2 + $0x4] sm:$0xf]
  %v32 = vld [vmem:[%s2 + $0x8] sm:$0xf]
  %v33 = vld [vmem:[%s2 + $0xc] sm:$0xf]
  %v34 = vld [vmem:[%s2 + $0x10] sm:$0xf]
  %v35 = vld [vmem:[%s2 + $0x14] sm:$0xf]
  %v40 = vunpack.c.l.b16 %v26
  %v41 = vunpack.c.l.b16 %v27
  %v42 = vunpack.c.l.b16 %v28
  %v43 = vunpack.c.l.b16 %v29
  %v44 = vpack.c.b16 %v41, %v40
  %v45 = vpack.c.b16 %v43, %v42
  %v52 = vunpack.c.l.b16 %v30
  %v53 = vunpack.c.l.b16 %v31
  %v54 = vunpack.c.l.b16 %v32
  %v55 = vunpack.c.l.b16 %v33
  %v56 = vunpack.c.l.b16 %v34
  %v57 = vunpack.c.l.b16 %v35
  %v58 = vpack.c.b16 %v53, %v52
  %v59 = vpack.c.b16 %v55, %v54
  %v60 = vpack.c.b16 %v57, %v56
  %vm64 = vcmask 392192
  %v66 = vsel %vm64, %v44, 0
  %v69 = vsel %vm64, %v45, 0
  %71 = vmatprep.subr.bf16.mxu0 0
  %72 = vmatpush1.bf16.msra.mxu0 %v58
  %73 = vmatprep.subr.bf16.mxu0 0
  %74 = vmatpush1.bf16.msra.mxu0 %v59
  %75 = vmatprep.subr.bf16.mxu0 0
  %76 = vmatpush1.bf16.msra.mxu0 %v60
  %77 = vmatprep.subr.bf16.mxu0 0
  %78 = vmatpush1.bf16.msra.mxu0 0
  %79 = vmatprep.subr.bf16.mxu0 0
  %80 = vmatpush1.bf16.msra.mxu0 0
  %81 = vmatprep.subr.bf16.mxu0 0
  %82 = vmatpush1.bf16.msra.mxu0 0
  %83 = vmatprep.subr.bf16.mxu0 0
  %84 = vmatpush1.bf16.msra.mxu0 0
  %85 = vmatprep.subr.bf16.mxu0 0
  %86 = vmatpush1.bf16.msra.mxu0 0
  %87 = vmatprep.subr.bf16.mxu0 0
  %88 = vmatpush1.bf16.msra.mxu0 0
  %89 = vmatprep.subr.bf16.mxu0 0
  %90 = vmatpush1.bf16.msra.mxu0 0
  %91 = vmatprep.subr.bf16.mxu0 0
  %92 = vmatpush1.bf16.msra.mxu0 0
  %93 = vmatprep.subr.bf16.mxu0 0
  %94 = vmatpush1.bf16.msra.mxu0 0
  %95 = vmatprep.subr.bf16.mxu0 0
  %96 = vmatpush1.bf16.msra.mxu0 0
  %97 = vmatprep.subr.bf16.mxu0 0
  %98 = vmatpush1.bf16.msra.mxu0 0
  %99 = vmatprep.subr.bf16.mxu0 0
  %100 = vmatpush1.bf16.msra.mxu0 0
  %101 = vmatprep.subr.bf16.mxu0 0
  %102 = vmatpush1.bf16.msra.mxu0 0
  %103 = vmatprep.mubr.bf16.mxu0 0
  %104 = vmatmul.mubr.bf16.gmra.mrb[0].mxu0 %v66
  %v105 = vpop.f32.mrb[0].mxu0
  %v106 = vadd.f32 0.0, %v105
  %v107 = vpop.f32.mrb[0].mxu0
  %v108 = vpop.f32.mrb[0].mxu0
  %v109 = vadd.f32 0.0, %v108
  %v110 = vpop.f32.mrb[0].mxu0
  %111 = vmatprep.mubr.bf16.mxu0 0
  %112 = vmatmul.mubr.bf16.gmra.mrb[0].mxu0 %v69
  %v113 = vpop.f32.mrb[0].mxu0
  %v114 = vadd.f32 0.0, %v113
  %v115 = vpop.f32.mrb[0].mxu0
  %v116 = vpop.f32.mrb[0].mxu0
  %v117 = vadd.f32 0.0, %v116
  %v118 = vpop.f32.mrb[0].mxu0
  %119 = vdwg.mxu0
  %v120 = vld [vmem:[%s3] sm:$0x1]
  %v122 = vlaneseq
  %v123 = vshrl.u32 %v122, 7
  %v124 = vsub.s32 0, %v123
  %v125 = vrot.slane %v120, %v124
  %126 = vrot.lane.b32.xlu0 %v125, 32
  %v127 = vpop.permute.xlu0 %126
  %v129 = vadd.f32 %v106, %v127
  %v130 = vadd.f32 %v109, %v127
  %v131 = vadd.f32 %v114, %v127
  %v132 = vadd.f32 %v117, %v127
  %137 = vrot.lane.b32.xlu0 %v106, 63
  %v138 = vpop.permute.xlu0 %137
  %139 = vrot.lane.b32.xlu0 %v109, 63
  %v140 = vpop.permute.xlu0 %139
  %141 = vrot.lane.b32.xlu0 %v114, 63
  %v142 = vpop.permute.xlu0 %141
  %143 = vrot.lane.b32.xlu0 %v117, 63
  %v144 = vpop.permute.xlu0 %143
  %149 = vxpose.xlu0.b32.start [1/16] %v138, 128
  %150 = vxpose.xlu0.b32.cont [2/16] 0.0, 128
  %151 = vxpose.xlu0.b32.cont [3/16] 0.0, 128
  %152 = vxpose.xlu0.b32.cont [4/16] 0.0, 128
  %153 = vxpose.xlu0.b32.cont [5/16] 0.0, 128
  %154 = vxpose.xlu0.b32.cont [6/16] 0.0, 128
  %155 = vxpose.xlu0.b32.cont [7/16] 0.0, 128
  %156 = vxpose.xlu0.b32.cont [8/16] 0.0, 128
  %157 = vxpose.xlu0.b32.cont [9/16] 0.0, 128
  %158 = vxpose.xlu0.b32.cont [10/16] 0.0, 128
  %159 = vxpose.xlu0.b32.cont [11/16] 0.0, 128
  %160 = vxpose.xlu0.b32.cont [12/16] 0.0, 128
  %161 = vxpose.xlu0.b32.cont [13/16] 0.0, 128
  %162 = vxpose.xlu0.b32.cont [14/16] 0.0, 128
  %163 = vxpose.xlu0.b32.cont [15/16] 0.0, 128
  %164 = vxpose.xlu0.b32.end [16/16] 0.0, 128
  %v165 = vpop.trf.xlu0
  %v166 = vpop.trf.xlu0
  %v167 = vpop.trf.xlu0
  %v168 = vpop.trf.xlu0
  %v169 = vpop.trf.xlu0
  %v170 = vpop.trf.xlu0
  %v171 = vpop.trf.xlu0
  %v172 = vpop.trf.xlu0
  %v173 = vpop.trf.xlu0
  %v174 = vpop.trf.xlu0
  %v175 = vpop.trf.xlu0
  %v176 = vpop.trf.xlu0
  %v177 = vpop.trf.xlu0
  %v178 = vpop.trf.xlu0
  %v179 = vpop.trf.xlu0
  %v180 = vpop.trf.xlu0
  %181 = vxpose.xlu0.b32.start [1/16] %v140, 128
  %182 = vxpose.xlu0.b32.cont [2/16] 0.0, 128
  %183 = vxpose.xlu0.b32.cont [3/16] 0.0, 128
  %184 = vxpose.xlu0.b32.cont [4/16] 0.0, 128
  %185 = vxpose.xlu0.b32.cont [5/16] 0.0, 128
  %186 = vxpose.xlu0.b32.cont [6/16] 0.0, 128
  %187 = vxpose.xlu0.b32.cont [7/16] 0.0, 128
  %188 = vxpose.xlu0.b32.cont [8/16] 0.0, 128
  %189 = vxpose.xlu0.b32.cont [9/16] 0.0, 128
  %190 = vxpose.xlu0.b32.cont [10/16] 0.0, 128
  %191 = vxpose.xlu0.b32.cont [11/16] 0.0, 128
  %192 = vxpose.xlu0.b32.cont [12/16] 0.0, 128
  %193 = vxpose.xlu0.b32.cont [13/16] 0.0, 128
  %194 = vxpose.xlu0.b32.cont [14/16] 0.0, 128
  %195 = vxpose.xlu0.b32.cont [15/16] 0.0, 128
  %196 = vxpose.xlu0.b32.end [16/16] 0.0, 128
  %v197 = vpop.trf.xlu0
  %v198 = vpop.trf.xlu0
  %v199 = vpop.trf.xlu0
  %v200 = vpop.trf.xlu0
  %v201 = vpop.trf.xlu0
  %v202 = vpop.trf.xlu0
  %v203 = vpop.trf.xlu0
  %v204 = vpop.trf.xlu0
  %v205 = vpop.trf.xlu0
  %v206 = vpop.trf.xlu0
  %v207 = vpop.trf.xlu0
  %v208 = vpop.trf.xlu0
  %v209 = vpop.trf.xlu0
  %v210 = vpop.trf.xlu0
  %v211 = vpop.trf.xlu0
  %v212 = vpop.trf.xlu0
  %213 = vxpose.xlu0.b32.start [1/16] %v142, 128
  %214 = vxpose.xlu0.b32.cont [2/16] 0.0, 128
  %215 = vxpose.xlu0.b32.cont [3/16] 0.0, 128
  %216 = vxpose.xlu0.b32.cont [4/16] 0.0, 128
  %217 = vxpose.xlu0.b32.cont [5/16] 0.0, 128
  %218 = vxpose.xlu0.b32.cont [6/16] 0.0, 128
  %219 = vxpose.xlu0.b32.cont [7/16] 0.0, 128
  %220 = vxpose.xlu0.b32.cont [8/16] 0.0, 128
  %221 = vxpose.xlu0.b32.cont [9/16] 0.0, 128
  %222 = vxpose.xlu0.b32.cont [10/16] 0.0, 128
  %223 = vxpose.xlu0.b32.cont [11/16] 0.0, 128
  %224 = vxpose.xlu0.b32.cont [12/16] 0.0, 128
  %225 = vxpose.xlu0.b32.cont [13/16] 0.0, 128
  %226 = vxpose.xlu0.b32.cont [14/16] 0.0, 128
  %227 = vxpose.xlu0.b32.cont [15/16] 0.0, 128
  %228 = vxpose.xlu0.b32.end [16/16] 0.0, 128
  %v229 = vpop.trf.xlu0
  %v230 = vpop.trf.xlu0
  %v231 = vpop.trf.xlu0
  %v232 = vpop.trf.xlu0
  %v233 = vpop.trf.xlu0
  %v234 = vpop.trf.xlu0
  %v235 = vpop.trf.xlu0
  %v236 = vpop.trf.xlu0
  %v237 = vpop.trf.xlu0
  %v238 = vpop.trf.xlu0
  %v239 = vpop.trf.xlu0
  %v240 = vpop.trf.xlu0
  %v241 = vpop.trf.xlu0
  %v242 = vpop.trf.xlu0
  %v243 = vpop.trf.xlu0
  %v244 = vpop.trf.xlu0
  %245 = vxpose.xlu0.b32.start [1/16] %v144, 128
  %246 = vxpose.xlu0.b32.cont [2/16] 0.0, 128
  %247 = vxpose.xlu0.b32.cont [3/16] 0.0, 128
  %248 = vxpose.xlu0.b32.cont [4/16] 0.0, 128
  %249 = vxpose.xlu0.b32.cont [5/16] 0.0, 128
  %250 = vxpose.xlu0.b32.cont [6/16] 0.0, 128
  %251 = vxpose.xlu0.b32.cont [7/16] 0.0, 128
  %252 = vxpose.xlu0.b32.cont [8/16] 0.0, 128
  %253 = vxpose.xlu0.b32.cont [9/16] 0.0, 128
  %254 = vxpose.xlu0.b32.cont [10/16] 0.0, 128
  %255 = vxpose.xlu0.b32.cont [11/16] 0.0, 128
  %256 = vxpose.xlu0.b32.cont [12/16] 0.0, 128
  %257 = vxpose.xlu0.b32.cont [13/16] 0.0, 128
  %258 = vxpose.xlu0.b32.cont [14/16] 0.0, 128
  %259 = vxpose.xlu0.b32.cont [15/16] 0.0, 128
  %260 = vxpose.xlu0.b32.end [16/16] 0.0, 128
  %v261 = vpop.trf.xlu0
  %v262 = vpop.trf.xlu0
  %v263 = vpop.trf.xlu0
  %v264 = vpop.trf.xlu0
  %v265 = vpop.trf.xlu0
  %v266 = vpop.trf.xlu0
  %v267 = vpop.trf.xlu0
  %v268 = vpop.trf.xlu0
  %v269 = vpop.trf.xlu0
  %v270 = vpop.trf.xlu0
  %v271 = vpop.trf.xlu0
  %v272 = vpop.trf.xlu0
  %v273 = vpop.trf.xlu0
  %v274 = vpop.trf.xlu0
  %v275 = vpop.trf.xlu0
  %v276 = vpop.trf.xlu0
  %277 = vset.pattern.permute.xlu0 64
  %278 = vperm.xlu0 %277, %v106
  %v279 = vpop.permute.xlu0 %278
  %281 = vset.pattern.permute.xlu0 64
  %282 = vperm.xlu0 %281, %v109
  %v283 = vpop.permute.xlu0 %282
  %285 = vset.pattern.permute.xlu0 64
  %286 = vperm.xlu0 %285, %v114
  %v287 = vpop.permute.xlu0 %286
  %289 = vset.pattern.permute.xlu0 64
  %290 = vperm.xlu0 %289, %v117
  %v291 = vpop.permute.xlu0 %290
  %v293 = vlaneseq
  %v294 = vshrl.u32 %v293, 7
  %v295 = vsub.s32 0, %v294
  %v296 = vrot.slane %v165, %v295
  %v297 = vlaneseq
  %v298 = vshrl.u32 %v297, 7
  %v299 = vsub.s32 0, %v298
  %v300 = vrot.slane %v197, %v299
  %v301 = vlaneseq
  %v302 = vshrl.u32 %v301, 7
  %v303 = vsub.s32 0, %v302
  %v304 = vrot.slane %v229, %v303
  %v305 = vlaneseq
  %v306 = vshrl.u32 %v305, 7
  %v307 = vsub.s32 0, %v306
  %v308 = vrot.slane %v261, %v307
  %v309 = vadd.f32 %v279, %v296
  %v310 = vadd.f32 %v283, %v300
  %v311 = vadd.f32 %v287, %v304
  %v312 = vadd.f32 %v291, %v308
  %vm313 = vcmp.gt.f32.partialorder %v309, 0.0
  %vm314 = vcmp.gt.f32.partialorder %v310, 0.0
  %vm315 = vcmp.gt.f32.partialorder %v311, 0.0
  %vm316 = vcmp.gt.f32.partialorder %v312, 0.0
  %v317 = vmul.f32 %v309, 2.0
  %v318 = vmul.f32 %v310, 2.0
  %v319 = vmul.f32 %v311, 2.0
  %v320 = vmul.f32 %v312, 2.0
  %v321 = vsel %vm313, %v309, %v317
  %v322 = vsel %vm314, %v310, %v318
  %v323 = vsel %vm315, %v311, %v319
  %v324 = vsel %vm316, %v312, %v320
  %v325 = vld [vmem:[%s1] sm:$0xf]
  %v326 = vld [vmem:[%s1 + $0x4] sm:$0xf]
  %v327 = vld [vmem:[%s1 + $0x8] sm:$0xf]
  %v328 = vld [vmem:[%s1 + $0xc] sm:$0xf]
  %vm329 = vcmp.gt.bf16.partialorder %v325, 0
  %vm330 = vcmp.gt.bf16.partialorder %v326, 0
  %vm331 = vcmp.gt.bf16.partialorder %v327, 0
  %vm332 = vcmp.gt.bf16.partialorder %v328, 0
  %v333 = vsel %vm329, 65537, 0
  %v334 = vsel %vm330, 65537, 0
  %v335 = vsel %vm331, 65537, 0
  %v336 = vsel %vm332, 65537, 0
  %v337 = vunpack.c.l.b16 %v333
  %v338 = vunpack.c.l.b16 %v334
  %v339 = vunpack.c.l.b16 %v335
  %v340 = vunpack.c.l.b16 %v336
  %vm341 = vcmp.ne.s32.totalorder %v337, 0
  %vm342 = vcmp.ne.s32.totalorder %v338, 0
  %vm343 = vcmp.ne.s32.totalorder %v339, 0
  %vm344 = vcmp.ne.s32.totalorder %v340, 0
  %v345 = vsel %vm341, %v321, -9e+15
  %v346 = vsel %vm342, %v322, -9e+15
  %v347 = vsel %vm343, %v323, -9e+15
  %v348 = vsel %vm344, %v324, -9e+15
  %vm349 = vcmask 64512
  %v350 = vsel %vm349, %v345, -inf
  %351 = vmax.xlane.f32.xlu0 %v350
  %v352 = vpop.xlane.xlu0 %351
  %v353 = vsel %vm349, %v346, -inf
  %354 = vmax.xlane.f32.xlu0 %v353
  %v355 = vpop.xlane.xlu0 %354
  %v356 = vsel %vm349, %v347, -inf
  %357 = vmax.xlane.f32.xlu0 %v356
  %v358 = vpop.xlane.xlu0 %357
  %v359 = vsel %vm349, %v348, -inf
  %360 = vmax.xlane.f32.xlu0 %v359
  %v361 = vpop.xlane.xlu0 %360
  %v362 = vsub.f32 %v345, %v352
  %v363 = vsub.f32 %v346, %v355
  %v364 = vsub.f32 %v347, %v358
  %v365 = vsub.f32 %v348, %v361
  %v366 = vmul.f32 %v362, 1.442695
  %v367 = vpow.pop %v366
  %v368 = vmul.f32 %v363, 1.442695
  %v369 = vpow.pop %v368
  %v370 = vmul.f32 %v364, 1.442695
  %v371 = vpow.pop %v370
  %v372 = vmul.f32 %v365, 1.442695
  %v373 = vpow.pop %v372
  %v374 = vsel %vm349, %v367, 0.0
  %375 = vadd.xlane.f32.xlu0 %v374
  %v376 = vpop.xlane.xlu0 %375
  %v377 = vsel %vm349, %v369, 0.0
  %378 = vadd.xlane.f32.xlu0 %v377
  %v379 = vpop.xlane.xlu0 %378
  %v380 = vsel %vm349, %v371, 0.0
  %381 = vadd.xlane.f32.xlu0 %v380
  %v382 = vpop.xlane.xlu0 %381
  %v383 = vsel %vm349, %v373, 0.0
  %384 = vadd.xlane.f32.xlu0 %v383
  %v385 = vpop.xlane.xlu0 %384
  %v386 = vrcp.pop %v376
  %v387 = vrcp.pop %v379
  %v388 = vrcp.pop %v382
  %v389 = vrcp.pop %v385
  %v390 = vmul.f32 %v367, %v386
  %v391 = vmul.f32 %v369, %v387
  %v392 = vmul.f32 %v371, %v388
  %v393 = vmul.f32 %v373, %v389
  %v394 = vpack.c.bf16 %v390, %v390
  %v395 = vpack.c.bf16 %v391, %v391
  %v396 = vpack.c.bf16 %v392, %v392
  %v397 = vpack.c.bf16 %v393, %v393
  %v398 = vpack.c.bf16 %v106, %v106
  %v399 = vpack.c.bf16 %v109, %v109
  %v400 = vpack.c.bf16 %v114, %v114
  %v401 = vpack.c.bf16 %v117, %v117
  %v403 = vsel %vm349, %v394, 0
  %vm405 = vcmask 1043456
  %v407 = vsel %vm405, %v398, 0
  %409 = vmatprep.subr.bf16.mxu0 0
  %410 = vmatpush1.bf16.msra.mxu0 %v407
  %411 = vmatprep.subr.bf16.mxu0 0
  %412 = vmatpush1.bf16.msra.mxu0 0
  %413 = vmatprep.subr.bf16.mxu0 0
  %414 = vmatpush1.bf16.msra.mxu0 0
  %415 = vmatprep.subr.bf16.mxu0 0
  %416 = vmatpush1.bf16.msra.mxu0 0
  %417 = vmatprep.subr.bf16.mxu0 0
  %418 = vmatpush1.bf16.msra.mxu0 0
  %419 = vmatprep.subr.bf16.mxu0 0
  %420 = vmatpush1.bf16.msra.mxu0 0
  %421 = vmatprep.subr.bf16.mxu0 0
  %422 = vmatpush1.bf16.msra.mxu0 0
  %423 = vmatprep.subr.bf16.mxu0 0
  %424 = vmatpush1.bf16.msra.mxu0 0
  %425 = vmatprep.subr.bf16.mxu0 0
  %426 = vmatpush1.bf16.msra.mxu0 0
  %427 = vmatprep.subr.bf16.mxu0 0
  %428 = vmatpush1.bf16.msra.mxu0 0
  %429 = vmatprep.subr.bf16.mxu0 0
  %430 = vmatpush1.bf16.msra.mxu0 0
  %431 = vmatprep.subr.bf16.mxu0 0
  %432 = vmatpush1.bf16.msra.mxu0 0
  %433 = vmatprep.subr.bf16.mxu0 0
  %434 = vmatpush1.bf16.msra.mxu0 0
  %435 = vmatprep.subr.bf16.mxu0 0
  %436 = vmatpush1.bf16.msra.mxu0 0
  %437 = vmatprep.subr.bf16.mxu0 0
  %438 = vmatpush1.bf16.msra.mxu0 0
  %439 = vmatprep.subr.bf16.mxu0 0
  %440 = vmatpush1.bf16.msra.mxu0 0
  %441 = vmatprep.mubr.bf16.mxu0 0
  %442 = vmatmul.mubr.bf16.gmra.mrb[0].mxu0 %v403
  %v443 = vpop.f32.mrb[0].mxu0
  %v444 = vadd.f32 0.0, %v443
  %v445 = vpop.f32.mrb[0].mxu0
  %v446 = vpop.f32.mrb[0].mxu0
  %v447 = vpop.f32.mrb[0].mxu0
  %448 = vdwg.mxu0
  %v450 = vsel %vm349, %v395, 0
  %v453 = vsel %vm405, %v399, 0
  %455 = vmatprep.subr.bf16.mxu0 0
  %456 = vmatpush1.bf16.msra.mxu0 %v453
  %457 = vmatprep.subr.bf16.mxu0 0
  %458 = vmatpush1.bf16.msra.mxu0 0
  %459 = vmatprep.subr.bf16.mxu0 0
  %460 = vmatpush1.bf16.msra.mxu0 0
  %461 = vmatprep.subr.bf16.mxu0 0
  %462 = vmatpush1.bf16.msra.mxu0 0
  %463 = vmatprep.subr.bf16.mxu0 0
  %464 = vmatpush1.bf16.msra.mxu0 0
  %465 = vmatprep.subr.bf16.mxu0 0
  %466 = vmatpush1.bf16.msra.mxu0 0
  %467 = vmatprep.subr.bf16.mxu0 0
  %468 = vmatpush1.bf16.msra.mxu0 0
  %469 = vmatprep.subr.bf16.mxu0 0
  %470 = vmatpush1.bf16.msra.mxu0 0
  %471 = vmatprep.subr.bf16.mxu0 0
  %472 = vmatpush1.bf16.msra.mxu0 0
  %473 = vmatprep.subr.bf16.mxu0 0
  %474 = vmatpush1.bf16.msra.mxu0 0
  %475 = vmatprep.subr.bf16.mxu0 0
  %476 = vmatpush1.bf16.msra.mxu0 0
  %477 = vmatprep.subr.bf16.mxu0 0
  %478 = vmatpush1.bf16.msra.mxu0 0
  %479 = vmatprep.subr.bf16.mxu0 0
  %480 = vmatpush1.bf16.msra.mxu0 0
  %481 = vmatprep.subr.bf16.mxu0 0
  %482 = vmatpush1.bf16.msra.mxu0 0
  %483 = vmatprep.subr.bf16.mxu0 0
  %484 = vmatpush1.bf16.msra.mxu0 0
  %485 = vmatprep.subr.bf16.mxu0 0
  %486 = vmatpush1.bf16.msra.mxu0 0
  %487 = vmatprep.mubr.bf16.mxu0 0
  %488 = vmatmul.mubr.bf16.gmra.mrb[0].mxu0 %v450
  %v489 = vpop.f32.mrb[0].mxu0
  %v490 = vadd.f32 0.0, %v489
  %v491 = vpop.f32.mrb[0].mxu0
  %v492 = vpop.f32.mrb[0].mxu0
  %v493 = vpop.f32.mrb[0].mxu0
  %494 = vdwg.mxu0
  %v496 = vsel %vm349, %v396, 0
  %v499 = vsel %vm405, %v400, 0
  %501 = vmatprep.subr.bf16.mxu0 0
  %502 = vmatpush1.bf16.msra.mxu0 %v499
  %503 = vmatprep.subr.bf16.mxu0 0
  %504 = vmatpush1.bf16.msra.mxu0 0
  %505 = vmatprep.subr.bf16.mxu0 0
  %506 = vmatpush1.bf16.msra.mxu0 0
  %507 = vmatprep.subr.bf16.mxu0 0
  %508 = vmatpush1.bf16.msra.mxu0 0
  %509 = vmatprep.subr.bf16.mxu0 0
  %510 = vmatpush1.bf16.msra.mxu0 0
  %511 = vmatprep.subr.bf16.mxu0 0
  %512 = vmatpush1.bf16.msra.mxu0 0
  %513 = vmatprep.subr.bf16.mxu0 0
  %514 = vmatpush1.bf16.msra.mxu0 0
  %515 = vmatprep.subr.bf16.mxu0 0
  %516 = vmatpush1.bf16.msra.mxu0 0
  %517 = vmatprep.subr.bf16.mxu0 0
  %518 = vmatpush1.bf16.msra.mxu0 0
  %519 = vmatprep.subr.bf16.mxu0 0
  %520 = vmatpush1.bf16.msra.mxu0 0
  %521 = vmatprep.subr.bf16.mxu0 0
  %522 = vmatpush1.bf16.msra.mxu0 0
  %523 = vmatprep.subr.bf16.mxu0 0
  %524 = vmatpush1.bf16.msra.mxu0 0
  %525 = vmatprep.subr.bf16.mxu0 0
  %526 = vmatpush1.bf16.msra.mxu0 0
  %527 = vmatprep.subr.bf16.mxu0 0
  %528 = vmatpush1.bf16.msra.mxu0 0
  %529 = vmatprep.subr.bf16.mxu0 0
  %530 = vmatpush1.bf16.msra.mxu0 0
  %531 = vmatprep.subr.bf16.mxu0 0
  %532 = vmatpush1.bf16.msra.mxu0 0
  %533 = vmatprep.mubr.bf16.mxu0 0
  %534 = vmatmul.mubr.bf16.gmra.mrb[0].mxu0 %v496
  %v535 = vpop.f32.mrb[0].mxu0
  %v536 = vadd.f32 0.0, %v535
  %v537 = vpop.f32.mrb[0].mxu0
  %v538 = vpop.f32.mrb[0].mxu0
  %v539 = vpop.f32.mrb[0].mxu0
  %540 = vdwg.mxu0
  %v542 = vsel %vm349, %v397, 0
  %v545 = vsel %vm405, %v401, 0
  %547 = vmatprep.subr.bf16.mxu0 0
  %548 = vmatpush1.bf16.msra.mxu0 %v545
  %549 = vmatprep.subr.bf16.mxu0 0
  %550 = vmatpush1.bf16.msra.mxu0 0
  %551 = vmatprep.subr.bf16.mxu0 0
  %552 = vmatpush1.bf16.msra.mxu0 0
  %553 = vmatprep.subr.bf16.mxu0 0
  %554 = vmatpush1.bf16.msra.mxu0 0
  %555 = vmatprep.subr.bf16.mxu0 0
  %556 = vmatpush1.bf16.msra.mxu0 0
  %557 = vmatprep.subr.bf16.mxu0 0
  %558 = vmatpush1.bf16.msra.mxu0 0
  %559 = vmatprep.subr.bf16.mxu0 0
  %560 = vmatpush1.bf16.msra.mxu0 0
  %561 = vmatprep.subr.bf16.mxu0 0
  %562 = vmatpush1.bf16.msra.mxu0 0
  %563 = vmatprep.subr.bf16.mxu0 0
  %564 = vmatpush1.bf16.msra.mxu0 0
  %565 = vmatprep.subr.bf16.mxu0 0
  %566 = vmatpush1.bf16.msra.mxu0 0
  %567 = vmatprep.subr.bf16.mxu0 0
  %568 = vmatpush1.bf16.msra.mxu0 0
  %569 = vmatprep.subr.bf16.mxu0 0
  %570 = vmatpush1.bf16.msra.mxu0 0
  %571 = vmatprep.subr.bf16.mxu0 0
  %572 = vmatpush1.bf16.msra.mxu0 0
  %573 = vmatprep.subr.bf16.mxu0 0
  %574 = vmatpush1.bf16.msra.mxu0 0
  %575 = vmatprep.subr.bf16.mxu0 0
  %576 = vmatpush1.bf16.msra.mxu0 0
  %577 = vmatprep.subr.bf16.mxu0 0
  %578 = vmatpush1.bf16.msra.mxu0 0
  %579 = vmatprep.mubr.bf16.mxu0 0
  %580 = vmatmul.mubr.bf16.gmra.mrb[0].mxu0 %v542
  %v581 = vpop.f32.mrb[0].mxu0
  %v582 = vadd.f32 0.0, %v581
  %v583 = vpop.f32.mrb[0].mxu0
  %v584 = vpop.f32.mrb[0].mxu0
  %v585 = vpop.f32.mrb[0].mxu0
  %586 = vdwg.mxu0
  %vm587 = vcmp.gt.f32.partialorder %v444, 0.0
  %vm588 = vcmp.gt.f32.partialorder %v490, 0.0
  %vm589 = vcmp.gt.f32.partialorder %v536, 0.0
  %vm590 = vcmp.gt.f32.partialorder %v582, 0.0
  %v591 = vmin.f32 %v444, 0.0
  %v592 = vmin.f32 %v490, 0.0
  %v593 = vmin.f32 %v536, 0.0
  %v594 = vmin.f32 %v582, 0.0
  %v595 = vmul.f32 %v591, 1.442695
  %v596 = vpow.pop %v595
  %v597 = vmul.f32 %v592, 1.442695
  %v598 = vpow.pop %v597
  %v599 = vmul.f32 %v593, 1.442695
  %v600 = vpow.pop %v599
  %v601 = vmul.f32 %v594, 1.442695
  %v602 = vpow.pop %v601
  %v603 = vsub.f32 %v596, 1.0
  %v604 = vsub.f32 %v598, 1.0
  %v605 = vsub.f32 %v600, 1.0
  %v606 = vsub.f32 %v602, 1.0
  %v607 = vsel %vm587, %v444, %v603
  %v608 = vsel %vm588, %v490, %v604
  %v609 = vsel %vm589, %v536, %v605
  %v610 = vsel %vm590, %v582, %v606
  %v611 = vpack.c.bf16 %v608, %v607
  %v612 = vpack.c.bf16 %v610, %v609
  %v613 = vld [vmem:[%s4] sm:$0xf]
  %v614 = vld [vmem:[%s4 + $0x4] sm:$0xf]
  %v615 = vld [vmem:[%s4 + $0x8] sm:$0xf]
  %v616 = vld [vmem:[%s4 + $0xc] sm:$0xf]
  %v621 = vunpack.c.l.b16 %v613
  %v622 = vunpack.c.l.b16 %v614
  %v623 = vunpack.c.l.b16 %v615
  %v624 = vunpack.c.l.b16 %v616
  %v625 = vpack.c.b16 %v622, %v621
  %v626 = vpack.c.b16 %v624, %v623
  %629 = vrot.lane.b32.xlu0 %v106, 62
  %v630 = vpop.permute.xlu0 %629
  %631 = vrot.lane.b32.xlu0 %v109, 62
  %v632 = vpop.permute.xlu0 %631
  %633 = vrot.lane.b32.xlu0 %v114, 62
  %v634 = vpop.permute.xlu0 %633
  %635 = vrot.lane.b32.xlu0 %v117, 62
  %v636 = vpop.permute.xlu0 %635
  %vm641 = vcmask 261120
  %v643 = vsel %vm641, %v611, 0
  %v646 = vsel %vm641, %v612, 0
  %648 = vmatprep.subr.bf16.mxu0 0
  %649 = vmatpush1.bf16.msra.mxu0 %v625
  %650 = vmatprep.subr.bf16.mxu0 0
  %651 = vmatpush1.bf16.msra.mxu0 %v626
  %652 = vmatprep.subr.bf16.mxu0 0
  %653 = vmatpush1.bf16.msra.mxu0 0
  %654 = vmatprep.subr.bf16.mxu0 0
  %655 = vmatpush1.bf16.msra.mxu0 0
  %656 = vmatprep.subr.bf16.mxu0 0
  %657 = vmatpush1.bf16.msra.mxu0 0
  %658 = vmatprep.subr.bf16.mxu0 0
  %659 = vmatpush1.bf16.msra.mxu0 0
  %660 = vmatprep.subr.bf16.mxu0 0
  %661 = vmatpush1.bf16.msra.mxu0 0
  %662 = vmatprep.subr.bf16.mxu0 0
  %663 = vmatpush1.bf16.msra.mxu0 0
  %664 = vmatprep.subr.bf16.mxu0 0
  %665 = vmatpush1.bf16.msra.mxu0 0
  %666 = vmatprep.subr.bf16.mxu0 0
  %667 = vmatpush1.bf16.msra.mxu0 0
  %668 = vmatprep.subr.bf16.mxu0 0
  %669 = vmatpush1.bf16.msra.mxu0 0
  %670 = vmatprep.subr.bf16.mxu0 0
  %671 = vmatpush1.bf16.msra.mxu0 0
  %672 = vmatprep.subr.bf16.mxu0 0
  %673 = vmatpush1.bf16.msra.mxu0 0
  %674 = vmatprep.subr.bf16.mxu0 0
  %675 = vmatpush1.bf16.msra.mxu0 0
  %676 = vmatprep.subr.bf16.mxu0 0
  %677 = vmatpush1.bf16.msra.mxu0 0
  %678 = vmatprep.subr.bf16.mxu0 0
  %679 = vmatpush1.bf16.msra.mxu0 0
  %680 = vmatprep.mubr.bf16.mxu0 0
  %681 = vmatmul.mubr.bf16.gmra.mrb[0].mxu0 %v643
  %v682 = vpop.f32.mrb[0].mxu0
  %v683 = vadd.f32 %v630, %v682
  %v684 = vpop.f32.mrb[0].mxu0
  %v685 = vpop.f32.mrb[0].mxu0
  %v686 = vadd.f32 %v632, %v685
  %v687 = vpop.f32.mrb[0].mxu0
  %688 = vmatprep.mubr.bf16.mxu0 0
  %689 = vmatmul.mubr.bf16.gmra.mrb[0].mxu0 %v646
  %v690 = vpop.f32.mrb[0].mxu0
  %v691 = vadd.f32 %v634, %v690
  %v692 = vpop.f32.mrb[0].mxu0
  %v693 = vpop.f32.mrb[0].mxu0
  %v694 = vadd.f32 %v636, %v693
  %v695 = vpop.f32.mrb[0].mxu0
  %696 = vdwg.mxu0
  %v697 = vld [vmem:[%s5] sm:$0x1]
  %v699 = vlaneseq
  %v700 = vshrl.u32 %v699, 7
  %v701 = vsub.s32 0, %v700
  %v702 = vrot.slane %v697, %v701
  %v704 = vadd.f32 %v683, %v702
  %v705 = vadd.f32 %v686, %v702
  %v706 = vadd.f32 %v691, %v702
  %v707 = vadd.f32 %v694, %v702
  %v708 = vmax.f32 %v704, 0.0
  %v709 = vmax.f32 %v705, 0.0
  %v710 = vmax.f32 %v706, 0.0
  %v711 = vmax.f32 %v707, 0.0
  %716 = vrot.lane.b32.xlu0 %v129, 96
  %v717 = vpop.permute.xlu0 %716
  %718 = vrot.lane.b32.xlu0 %v130, 96
  %v719 = vpop.permute.xlu0 %718
  %720 = vrot.lane.b32.xlu0 %v131, 96
  %v721 = vpop.permute.xlu0 %720
  %722 = vrot.lane.b32.xlu0 %v132, 96
  %v723 = vpop.permute.xlu0 %722
  %728 = vst.msk [vmem:[%s6] sm:$0xff] %vm641, %v717
  %729 = vst.msk [vmem:[%s6 + $0x8] sm:$0xff] %vm641, %v719
  %730 = vst.msk [vmem:[%s6 + $0x10] sm:$0xff] %vm641, %v721
  %731 = vst.msk [vmem:[%s6 + $0x18] sm:$0xff] %vm641, %v723
  %736 = vrot.lane.b32.xlu0 %v708, 32
  %v737 = vpop.permute.xlu0 %736
  %738 = vrot.lane.b32.xlu0 %v709, 32
  %v739 = vpop.permute.xlu0 %738
  %740 = vrot.lane.b32.xlu0 %v710, 32
  %v741 = vpop.permute.xlu0 %740
  %742 = vrot.lane.b32.xlu0 %v711, 32
  %v743 = vpop.permute.xlu0 %742
  %vm748 = vcmask 326912
  %749 = vst.msk [vmem:[%s6] sm:$0xff] %vm748, %v737
  %750 = vst.msk [vmem:[%s6 + $0x8] sm:$0xff] %vm748, %v739
  %751 = vst.msk [vmem:[%s6 + $0x10] sm:$0xff] %vm748, %v741
  %752 = vst.msk [vmem:[%s6 + $0x18] sm:$0xff] %vm748, %v743
  // Predicated region
  $region26: #{simple_model_forward.1} parent=0 // pred_check
    _
  $region27: #{simple_model_forward.1} parent=0 // pred_check_branch
    %754 = sbr.rel (0) target = $region29
  $region28: #{simple_model_forward.1} parent=0 // pred_region
    _
  $region29: #{simple_model_forward.1} parent=0 // pred_fallthru
    _
  // Predicated region
  $region30: #{simple_model_forward.1} parent=0 // pred_check
    _
  $region31: #{simple_model_forward.1} parent=0 // pred_check_branch
    %756 = sbr.rel (0) target = $region33
  $region32: #{simple_model_forward.1} parent=0 // pred_region
    _
  $region33: #{simple_model_forward.1} parent=0 // pred_fallthru
    _

</llo_original>
